<compile_context>
chip_gen: v7x
topology: tpu7x:2x2x1
jax: 0.10.0
libtpu: 0.0.40
codegen_flags: <defaults>
</compile_context>

<pallas_src>
import math

import jax
import jax.numpy as jnp
from jax import lax
from jax.experimental import pallas as pl
from jax.experimental.pallas import tpu as pltpu


_VMEM_LIMIT_BYTES = 48 * 1024 * 1024    # explicit scoped limit: > v5e default, < v7x physical
_STREAM_BUDGET = 24 * 1024 * 1024       # target for any single double-buffered input stream
_K2_BUDGET = 40 * 1024 * 1024           # total working-set target for kernel 2


def _round_up(x, m):
    return ((x + m - 1) // m) * m


def _round_down(x, m):
    return (x // m) * m


# ---------------------------------------------------------------------------
# Kernel 1: fold the bilinear weight with the shared summary vector once.
#   t_flat[r, 0] = sum_j w2[r, j] * s[j]      with r = o * n_h + i
# Natural NN matmul: big streamed W tile is the LHS (K on lanes), tiny s column
# is the RHS (K on sublanes) -> no relayout of the dominant stream.
# ---------------------------------------------------------------------------
def _fold_ws_kernel(w2_ref, s_ref, t_ref):
    # w2_ref : [tw, J]   s_ref : [J, 1]   t_ref : [tw, 1]
    t_ref[...] = lax.dot_general(
        w2_ref[...], s_ref[...],
        dimension_numbers=(((1,), (0,)), ((), ())),    # [tw,J] x [J,1] -> [tw,1]
        preferred_element_type=jnp.float32,
    )


# ---------------------------------------------------------------------------
# Kernel 2: row-tiled bilinear logits for both views in one pass.
#   out[0, n, o] = sum_i h_pl[n, i] * T[i, o] + b[o]
#   out[1, n, o] = sum_i h_mi[n, i] * T[i, o] + b[o]
# One natural-NN MXU matmul per view per tile + one full-tile store per view.
# ---------------------------------------------------------------------------
def _bilinear_rows_kernel(hpl_ref, hmi_ref, t_ref, b_ref, out_ref):
    t = t_ref[...]            # [I, to]  (compute dtype; constant block index -> no re-DMA)
    bias = b_ref[...]         # [1, to]  f32 epilogue (v5e VPU has no bf16 ALUs)
    dn = (((1,), (0,)), ((), ()))   # [tm, I] x [I, to] -> [tm, to], natural NN
    sc_pl = lax.dot_general(hpl_ref[...], t, dn, preferred_element_type=jnp.float32)
    sc_mi = lax.dot_general(hmi_ref[...], t, dn, preferred_element_type=jnp.float32)
    out_ref[0, :, :] = (sc_pl + bias).astype(out_ref.dtype)
    out_ref[1, :, :] = (sc_mi + bias).astype(out_ref.dtype)


def discriminator_forward(s, h_pl, h_mi, W, b, batch=None, *,
                          tm=None, to=None, tw=None):
    """JAX/Pallas reproduction of Discriminator.forward.

    `batch` is accepted for signature fidelity but (as in the PyTorch module) it never
    affects the output, so it is ignored.  Compute dtype of the MXU follows the *stored*
    dtypes of W (kernel 1) and h (kernel 2) — no wrapper-side casts of the big streams.
    """
    del batch
    assert h_pl.shape == h_mi.shape and h_pl.dtype == h_mi.dtype
    N, I = h_pl.shape
    O, wi, J = W.shape
    assert wi == I and J == I, "nn.Bilinear(n_h, n_h, O) weight must be [O, n_h, n_h]"

    # ---- Kernel 1: t_flat[o*I + i] = sum_j W[o, i, j] * s[j]  (once, f32 accumulation) ----
    w_dtype = W.dtype
    w_itemsize = jnp.dtype(w_dtype).itemsize
    sub_w = max(8, 32 // w_itemsize)                        # sublane multiple (8 f32, 16 bf16)
    OI = O * I
    w2 = jnp.reshape(W, (OI, J))                            # free contiguous reshape, native dtype
    s_col = jnp.reshape(s, (J, 1)).astype(w_dtype)          # tiny cast only

    tw_cap = max(sub_w, _round_down(_STREAM_BUDGET // (2 * J * w_itemsize), sub_w))
    if tw is None:
        tw = min(OI, tw_cap, 8192)                          # ==OI (full) or a sub_w multiple
    grid_w = pl.cdiv(OI, tw)

    t_flat = pl.pallas_call(
        _fold_ws_kernel,
        out_shape=jax.ShapeDtypeStruct((OI, 1), jnp.float32),
        grid=(grid_w,),
        in_specs=[
            pl.BlockSpec((tw, J), lambda r: (r, 0)),        # stream W row-tiles (natural LHS)
            pl.BlockSpec((J, 1), lambda r: (0, 0)),         # s column stays resident
        ],
        out_specs=pl.BlockSpec((tw, 1), lambda r: (r, 0)),  # lane-sparse but tiny (O*I*4 B)
        compiler_params=pltpu.CompilerParams(
            dimension_semantics=("parallel",),
            vmem_limit_bytes=_VMEM_LIMIT_BYTES),
    )(w2, s_col)

    # Tiny [O, I] -> [I, O] transpose + cast (O*I elements) so kernel 2 sees a natural RHS.
    mxu_dtype = h_pl.dtype
    T = jnp.transpose(jnp.reshape(t_flat[:, 0], (O, I))).astype(mxu_dtype)   # [I, O]

    # ---- Kernel 2: logits for both views, tiled over rows (and O when large) ----
    h_itemsize = jnp.dtype(mxu_dtype).itemsize
    sub_h = max(8, 32 // h_itemsize)

    if to is None:
        to = O if O <= 512 else 512                         # bounds resident T / out block

    # Per-row VMEM: two h streams double-buffered + f32 output block (2 views) double-buffered.
    t_resident = 2 * I * to * h_itemsize
    per_row = 4 * I * h_itemsize + 16 * to
    tm_cap = max(sub_h, _round_down(max(0, _K2_BUDGET - t_resident) // per_row, sub_h))
    if tm is None:
        tm = min(1024, tm_cap)
        if tm >= N:
            if N > sub_h and pl.cdiv(O, to) < 2:
                # Split rows so there are >= 2 grid steps (v7x megacore uses both cores).
                tm = _round_up(pl.cdiv(N, 2), sub_h)
            else:
                tm = N                                      # full block (any N allowed)
    grid_rows = pl.cdiv(N, tm)
    grid_o = pl.cdiv(O, to)

    out_dtype = jnp.result_type(h_pl, W, b)
    b2 = jnp.reshape(b, (1, O)).astype(jnp.float32)         # f32 epilogue bias (tiny)

    out = pl.pallas_call(
        _bilinear_rows_kernel,
        out_shape=jax.ShapeDtypeStruct((2, N, O), out_dtype),
        grid=(grid_rows, grid_o),
        in_specs=[
            pl.BlockSpec((tm, I), lambda r, c: (r, 0)),     # h_pl tile (resident across o-axis)
            pl.BlockSpec((tm, I), lambda r, c: (r, 0)),     # h_mi tile
            pl.BlockSpec((I, to), lambda r, c: (0, c)),     # T[:, o-tile]  (natural RHS)
            pl.BlockSpec((1, to), lambda r, c: (0, c)),     # bias[o-tile]
        ],
        out_specs=pl.BlockSpec((2, tm, to), lambda r, c: (0, r, c)),
        compiler_params=pltpu.CompilerParams(
            dimension_semantics=("parallel", "parallel"),
            vmem_limit_bytes=_VMEM_LIMIT_BYTES),
    )(h_pl, h_mi, T, b2)

    # [2, N, O] -> [2N, O] is a free contiguous reshape == torch.cat((sc_1, sc_2), 0)
    logits = jnp.reshape(out, (2 * N, O))
    if O == 1:                                              # torch.squeeze(x, 1) semantics
        logits = logits[:, 0]
    return logits


def init_discriminator_params(key, n_h, batch_size):
    """Matches the module init: xavier_uniform_ weight, zero bias."""
    O, I, J = batch_size, n_h, n_h
    # torch xavier_uniform_ on a 3-D tensor: fan_in = size(1)*J, fan_out = size(0)*J
    fan_in = I * J
    fan_out = O * J
    bound = math.sqrt(6.0 / (fan_in + fan_out))
    W = jax.random.uniform(key, (O, I, J), minval=-bound, maxval=bound, dtype=jnp.float32)
    b = jnp.zeros((O,), dtype=jnp.float32)
    return W, b


def _reference(s, h_pl, h_mi, W, b):
    """Pure-JAX f32 reference (same math as torch.nn.functional.bilinear + squeeze + cat)."""
    f32 = jnp.float32
    s_vec = jnp.reshape(s, (-1,)).astype(f32)
    sc_1 = jnp.einsum("ni,oij,j->no", h_pl.astype(f32), W.astype(f32), s_vec) + b.astype(f32)
    sc_2 = jnp.einsum("ni,oij,j->no", h_mi.astype(f32), W.astype(f32), s_vec) + b.astype(f32)
    ref = jnp.concatenate([sc_1, sc_2], axis=0)
    if W.shape[0] == 1:
        ref = ref[:, 0]
    return ref


if __name__ == "__main__":
    key = jax.random.PRNGKey(0)
    n_h = 32   # hidden size
    N = 8      # node embeddings per view

    for batch_size in (4, 1):   # also exercise the O == 1 squeeze path
        k_s, k_pl, k_mi, k_w = jax.random.split(jax.random.fold_in(key, batch_size), 4)
        s = jax.random.normal(k_s, (1, n_h), dtype=jnp.float32)
        h_pl = jax.random.normal(k_pl, (N, n_h), dtype=jnp.float32)
        h_mi = jax.random.normal(k_mi, (N, n_h), dtype=jnp.float32)
        W, b = init_discriminator_params(k_w, n_h, batch_size)

        ref = _reference(s, h_pl, h_mi, W, b)

        # f32 path (exact)
        logits = jax.block_until_ready(discriminator_forward(s, h_pl, h_mi, W, b))
        assert logits.shape == ref.shape, (logits.shape, ref.shape)
        assert jnp.allclose(logits, ref, atol=1e-4, rtol=1e-4), \
            float(jnp.max(jnp.abs(logits - ref)))

        # Native-bf16 fast path: inputs already bf16, so no wrapper-side casts of the big
        # h / W streams are ever materialized — halves HBM traffic on all generations.
        sb, hpb, hmb, Wb, bb = (x.astype(jnp.bfloat16) for x in (s, h_pl, h_mi, W, b))
        logits_bf16 = jax.block_until_ready(discriminator_forward(sb, hpb, hmb, Wb, bb))
        assert logits_bf16.shape == ref.shape
        assert jnp.allclose(logits_bf16.astype(jnp.float32), ref, atol=0.3, rtol=0.15), \
            float(jnp.max(jnp.abs(logits_bf16.astype(jnp.float32) - ref)))

    print("KERNEL_OK")
</pallas_src>

<mosaic_0001>
module attributes {stable_mosaic.version = 11 : i64} {
  func.func @_fold_ws_kernel(%arg0: i32, %arg1: memref<128x32xf32, #tpu.memory_space<vmem>>, %arg2: memref<32x1xf32, #tpu.memory_space<vmem>>, %arg3: memref<128x1xf32, #tpu.memory_space<vmem>>) attributes {dimension_semantics = [#tpu.dimension_semantics<parallel>], iteration_bounds = array<i64: 1>, scalar_prefetch = 0 : i64, scratch_operands = 0 : i64, tpu.core_type = #tpu.core_type<tc>, window_params = [{transform_indices = @transform_0, window_bounds = array<i64: 128, 32>}, {pipeline_mode = #tpu.pipeline_mode<synchronous>, transform_indices = @transform_1, window_bounds = array<i64: 32, 1>}, {transform_indices = @transform_2, window_bounds = array<i64: 128, 1>}]} {
    %c0 = arith.constant 0 : index
    %c0_0 = arith.constant 0 : index
    %0 = vector.load %arg1[%c0, %c0_0] : memref<128x32xf32, #tpu.memory_space<vmem>>, vector<128x32xf32>
    %c0_1 = arith.constant 0 : index
    %c0_2 = arith.constant 0 : index
    %1 = vector.load %arg2[%c0_1, %c0_2] : memref<32x1xf32, #tpu.memory_space<vmem>>, vector<32x1xf32>
    %cst = arith.constant dense<0.000000e+00> : vector<128x1xf32>
    %2 = tpu.matmul %0, %1, %cst {dimension_numbers = #tpu.dot_dimension_numbers<[1], [0], [0], [1], [0, 0, 1, 1], [], []>} : vector<128x32xf32>, vector<32x1xf32>, vector<128x1xf32> -> vector<128x1xf32>
    %c0_3 = arith.constant 0 : index
    %c0_4 = arith.constant 0 : index
    %3 = vector.load %arg3[%c0_3, %c0_4] : memref<128x1xf32, #tpu.memory_space<vmem>>, vector<128x1xf32>
    tpu.vector_store %arg3[%c0_3, %c0_4], %2 {strides = array<i32>} : memref<128x1xf32, #tpu.memory_space<vmem>>, vector<128x1xf32>,
    return
  }
  func.func @transform_0(%arg0: i32) -> (i32, i32) {
    %c0_i32 = arith.constant 0 : i32
    %c0_i32_0 = arith.constant 0 : i32
    return %arg0, %c0_i32 : i32, i32
  }
  func.func @transform_1(%arg0: i32) -> (i32, i32) {
    %c0_i32 = arith.constant 0 : i32
    %c0_i32_0 = arith.constant 0 : i32
    %c0_i32_1 = arith.constant 0 : i32
    return %c0_i32, %c0_i32_0 : i32, i32
  }
  func.func @transform_2(%arg0: i32) -> (i32, i32) {
    %c0_i32 = arith.constant 0 : i32
    %c0_i32_0 = arith.constant 0 : i32
    return %arg0, %c0_i32 : i32, i32
  }
}

</mosaic_0001>

<llo_original>
// kernel: tpu_custom_call.1
$region0: #{tpu_custom_call.1}
  #allocation0 [shape = 'u32[]', space=smem, size = 0x4, offset = 0x4, fixed_abs, tag = 'smem constant byte address 0x4 - core index']
  #allocation1 [shape = 'u32[144,128]{1,0:T(1,128)}', space=vmem, size = 0x12000, scoped, tag = 'internal scratch']
  %s0 = inlined_call_operand.vmem [shape: f32[128,32], index: 0, kind: input, shape index: {}]
  %s1 = inlined_call_operand.vmem [shape: f32[32,1], index: 1, kind: input, shape index: {}]
  %s2 = inlined_call_operand.vmem [shape: f32[128,1], index: 2, kind: output, shape index: {}]
  %s3 = sld [smem:[#allocation0]]
  $region18: #{tpu_custom_call.1} parent=0
    _
  %s5 = ssub.s32 1, %s3
  %s6 = scalar_select 0, %s5, %s3
  // Predicated region
  $region2: #{tpu_custom_call.1} parent=0 // pred_check
    _
  $region3: #{tpu_custom_call.1} parent=0 // pred_check_branch
    %8 = sbr.rel (0) target = $region5
  $region4: #{tpu_custom_call.1} parent=0 // pred_region
    _
  $region5: #{tpu_custom_call.1} parent=0 // pred_fallthru
    _
  // Predicated region
  $region6: #{tpu_custom_call.1} parent=0 // pred_check
    _
  $region7: #{tpu_custom_call.1} parent=0 // pred_check_branch
    %10 = sbr.rel (0) target = $region9
  $region8: #{tpu_custom_call.1} parent=0 // pred_region
    _
  $region9: #{tpu_custom_call.1} parent=0 // pred_fallthru
    _
  %v11 = vld [vmem:[%s0] sm:$0xff]
  %v12 = vld [vmem:[%s0 + $0x8] sm:$0xff]
  %v13 = vld [vmem:[%s0 + $0x10] sm:$0xff]
  %v14 = vld [vmem:[%s0 + $0x18] sm:$0xff]
  %v15 = vld [vmem:[%s0 + $0x20] sm:$0xff]
  %v16 = vld [vmem:[%s0 + $0x28] sm:$0xff]
  %v17 = vld [vmem:[%s0 + $0x30] sm:$0xff]
  %v18 = vld [vmem:[%s0 + $0x38] sm:$0xff]
  %v19 = vld [vmem:[%s0 + $0x40] sm:$0xff]
  %v20 = vld [vmem:[%s0 + $0x48] sm:$0xff]
  %v21 = vld [vmem:[%s0 + $0x50] sm:$0xff]
  %v22 = vld [vmem:[%s0 + $0x58] sm:$0xff]
  %v23 = vld [vmem:[%s0 + $0x60] sm:$0xff]
  %v24 = vld [vmem:[%s0 + $0x68] sm:$0xff]
  %v25 = vld [vmem:[%s0 + $0x70] sm:$0xff]
  %v26 = vld [vmem:[%s0 + $0x78] sm:$0xff]
  %v27 = vld [vmem:[%s1] sm:$0xff]
  %v28 = vld [vmem:[%s1 + $0x8] sm:$0xff]
  %v29 = vld [vmem:[%s1 + $0x10] sm:$0xff]
  %v30 = vld [vmem:[%s1 + $0x18] sm:$0xff]
  %vm31 = vcmask 261120
  %v33 = vsel %vm31, %v11, 0
  %v36 = vsel %vm31, %v12, 0
  %v39 = vsel %vm31, %v13, 0
  %v42 = vsel %vm31, %v14, 0
  %v45 = vsel %vm31, %v15, 0
  %v48 = vsel %vm31, %v16, 0
  %v51 = vsel %vm31, %v17, 0
  %v54 = vsel %vm31, %v18, 0
  %v57 = vsel %vm31, %v19, 0
  %v60 = vsel %vm31, %v20, 0
  %v63 = vsel %vm31, %v21, 0
  %v66 = vsel %vm31, %v22, 0
  %v69 = vsel %vm31, %v23, 0
  %v72 = vsel %vm31, %v24, 0
  %v75 = vsel %vm31, %v25, 0
  %v78 = vsel %vm31, %v26, 0
  %80 = vmatprep.subr.mxu0 0.0
  %81 = vmatpush1.msra.mxu0 %v27
  %82 = vmatprep.subr.mxu0 0.0
  %83 = vmatpush1.msra.mxu0 %v28
  %84 = vmatprep.subr.mxu0 0.0
  %85 = vmatpush1.msra.mxu0 %v29
  %86 = vmatprep.subr.mxu0 0.0
  %87 = vmatpush1.msra.mxu0 %v30
  %88 = vmatprep.subr.mxu0 0.0
  %89 = vmatpush1.msra.mxu0 0.0
  %90 = vmatprep.subr.mxu0 0.0
  %91 = vmatpush1.msra.mxu0 0.0
  %92 = vmatprep.subr.mxu0 0.0
  %93 = vmatpush1.msra.mxu0 0.0
  %94 = vmatprep.subr.mxu0 0.0
  %95 = vmatpush1.msra.mxu0 0.0
  %96 = vmatprep.subr.mxu0 0.0
  %97 = vmatpush1.msra.mxu0 0.0
  %98 = vmatprep.subr.mxu0 0.0
  %99 = vmatpush1.msra.mxu0 0.0
  %100 = vmatprep.subr.mxu0 0.0
  %101 = vmatpush1.msra.mxu0 0.0
  %102 = vmatprep.subr.mxu0 0.0
  %103 = vmatpush1.msra.mxu0 0.0
  %104 = vmatprep.subr.mxu0 0.0
  %105 = vmatpush1.msra.mxu0 0.0
  %106 = vmatprep.subr.mxu0 0.0
  %107 = vmatpush1.msra.mxu0 0.0
  %108 = vmatprep.subr.mxu0 0.0
  %109 = vmatpush1.msra.mxu0 0.0
  %110 = vmatprep.subr.mxu0 0.0
  %111 = vmatpush1.msra.mxu0 0.0
  %112 = vmatprep.subr.mxu0 0.0
  %113 = vmatpush1.msra.mxu0 0.0
  %114 = vmatprep.subr.mxu0 0.0
  %115 = vmatpush1.msra.mxu0 0.0
  %116 = vmatprep.subr.mxu0 0.0
  %117 = vmatpush1.msra.mxu0 0.0
  %118 = vmatprep.subr.mxu0 0.0
  %119 = vmatpush1.msra.mxu0 0.0
  %120 = vmatprep.subr.mxu0 0.0
  %121 = vmatpush1.msra.mxu0 0.0
  %122 = vmatprep.subr.mxu0 0.0
  %123 = vmatpush1.msra.mxu0 0.0
  %124 = vmatprep.subr.mxu0 0.0
  %125 = vmatpush1.msra.mxu0 0.0
  %126 = vmatprep.subr.mxu0 0.0
  %127 = vmatpush1.msra.mxu0 0.0
  %128 = vmatprep.subr.mxu0 0.0
  %129 = vmatpush1.msra.mxu0 0.0
  %130 = vmatprep.subr.mxu0 0.0
  %131 = vmatpush1.msra.mxu0 0.0
  %132 = vmatprep.subr.mxu0 0.0
  %133 = vmatpush1.msra.mxu0 0.0
  %134 = vmatprep.subr.mxu0 0.0
  %135 = vmatpush1.msra.mxu0 0.0
  %136 = vmatprep.subr.mxu0 0.0
  %137 = vmatpush1.msra.mxu0 0.0
  %138 = vmatprep.subr.mxu0 0.0
  %139 = vmatpush1.msra.mxu0 0.0
  %140 = vmatprep.subr.mxu0 0.0
  %141 = vmatpush1.msra.mxu0 0.0
  %142 = vmatprep.subr.mxu0 0.0
  %143 = vmatpush1.msra.mxu0 0.0
  %144 = vmatprep.mubr.f32.mxu0 0.0
  %145 = vmatmul.mubr.f32.gmra.mrb[0].mxu0 %v33
  %v146 = vpop.f32.mrb[0].mxu0
  %v147 = vadd.f32 0.0, %v146
  %v148 = vpop.f32.mrb[0].mxu0
  %149 = vmatprep.mubr.f32.mxu0 0.0
  %150 = vmatmul.mubr.f32.gmra.mrb[0].mxu0 %v36
  %v151 = vpop.f32.mrb[0].mxu0
  %v152 = vadd.f32 0.0, %v151
  %v153 = vpop.f32.mrb[0].mxu0
  %154 = vmatprep.mubr.f32.mxu0 0.0
  %155 = vmatmul.mubr.f32.gmra.mrb[0].mxu0 %v39
  %v156 = vpop.f32.mrb[0].mxu0
  %v157 = vadd.f32 0.0, %v156
  %v158 = vpop.f32.mrb[0].mxu0
  %159 = vmatprep.mubr.f32.mxu0 0.0
  %160 = vmatmul.mubr.f32.gmra.mrb[0].mxu0 %v42
  %v161 = vpop.f32.mrb[0].mxu0
  %v162 = vadd.f32 0.0, %v161
  %v163 = vpop.f32.mrb[0].mxu0
  %164 = vmatprep.mubr.f32.mxu0 0.0
  %165 = vmatmul.mubr.f32.gmra.mrb[0].mxu0 %v45
  %v166 = vpop.f32.mrb[0].mxu0
  %v167 = vadd.f32 0.0, %v166
  %v168 = vpop.f32.mrb[0].mxu0
  %169 = vmatprep.mubr.f32.mxu0 0.0
  %170 = vmatmul.mubr.f32.gmra.mrb[0].mxu0 %v48
  %v171 = vpop.f32.mrb[0].mxu0
  %v172 = vadd.f32 0.0, %v171
  %v173 = vpop.f32.mrb[0].mxu0
  %174 = vmatprep.mubr.f32.mxu0 0.0
  %175 = vmatmul.mubr.f32.gmra.mrb[0].mxu0 %v51
  %v176 = vpop.f32.mrb[0].mxu0
  %v177 = vadd.f32 0.0, %v176
  %v178 = vpop.f32.mrb[0].mxu0
  %179 = vmatprep.mubr.f32.mxu0 0.0
  %180 = vmatmul.mubr.f32.gmra.mrb[0].mxu0 %v54
  %v181 = vpop.f32.mrb[0].mxu0
  %v182 = vadd.f32 0.0, %v181
  %v183 = vpop.f32.mrb[0].mxu0
  %184 = vmatprep.mubr.f32.mxu0 0.0
  %185 = vmatmul.mubr.f32.gmra.mrb[0].mxu0 %v57
  %v186 = vpop.f32.mrb[0].mxu0
  %v187 = vadd.f32 0.0, %v186
  %v188 = vpop.f32.mrb[0].mxu0
  %189 = vmatprep.mubr.f32.mxu0 0.0
  %190 = vmatmul.mubr.f32.gmra.mrb[0].mxu0 %v60
  %v191 = vpop.f32.mrb[0].mxu0
  %v192 = vadd.f32 0.0, %v191
  %v193 = vpop.f32.mrb[0].mxu0
  %194 = vmatprep.mubr.f32.mxu0 0.0
  %195 = vmatmul.mubr.f32.gmra.mrb[0].mxu0 %v63
  %v196 = vpop.f32.mrb[0].mxu0
  %v197 = vadd.f32 0.0, %v196
  %v198 = vpop.f32.mrb[0].mxu0
  %199 = vmatprep.mubr.f32.mxu0 0.0
  %200 = vmatmul.mubr.f32.gmra.mrb[0].mxu0 %v66
  %v201 = vpop.f32.mrb[0].mxu0
  %v202 = vadd.f32 0.0, %v201
  %v203 = vpop.f32.mrb[0].mxu0
  %204 = vmatprep.mubr.f32.mxu0 0.0
  %205 = vmatmul.mubr.f32.gmra.mrb[0].mxu0 %v69
  %v206 = vpop.f32.mrb[0].mxu0
  %v207 = vadd.f32 0.0, %v206
  %v208 = vpop.f32.mrb[0].mxu0
  %209 = vmatprep.mubr.f32.mxu0 0.0
  %210 = vmatmul.mubr.f32.gmra.mrb[0].mxu0 %v72
  %v211 = vpop.f32.mrb[0].mxu0
  %v212 = vadd.f32 0.0, %v211
  %v213 = vpop.f32.mrb[0].mxu0
  %214 = vmatprep.mubr.f32.mxu0 0.0
  %215 = vmatmul.mubr.f32.gmra.mrb[0].mxu0 %v75
  %v216 = vpop.f32.mrb[0].mxu0
  %v217 = vadd.f32 0.0, %v216
  %v218 = vpop.f32.mrb[0].mxu0
  %219 = vmatprep.mubr.f32.mxu0 0.0
  %220 = vmatmul.mubr.f32.gmra.mrb[0].mxu0 %v78
  %v221 = vpop.f32.mrb[0].mxu0
  %v222 = vadd.f32 0.0, %v221
  %v223 = vpop.f32.mrb[0].mxu0
  %224 = vdwg.mxu0
  %vm225 = vcmask 7168
  %226 = vst.msk [vmem:[%s2] sm:$0xff] %vm225, %v147
  %227 = vst.msk [vmem:[%s2 + $0x8] sm:$0xff] %vm225, %v152
  %228 = vst.msk [vmem:[%s2 + $0x10] sm:$0xff] %vm225, %v157
  %229 = vst.msk [vmem:[%s2 + $0x18] sm:$0xff] %vm225, %v162
  %230 = vst.msk [vmem:[%s2 + $0x20] sm:$0xff] %vm225, %v167
  %231 = vst.msk [vmem:[%s2 + $0x28] sm:$0xff] %vm225, %v172
  %232 = vst.msk [vmem:[%s2 + $0x30] sm:$0xff] %vm225, %v177
  %233 = vst.msk [vmem:[%s2 + $0x38] sm:$0xff] %vm225, %v182
  %234 = vst.msk [vmem:[%s2 + $0x40] sm:$0xff] %vm225, %v187
  %235 = vst.msk [vmem:[%s2 + $0x48] sm:$0xff] %vm225, %v192
  %236 = vst.msk [vmem:[%s2 + $0x50] sm:$0xff] %vm225, %v197
  %237 = vst.msk [vmem:[%s2 + $0x58] sm:$0xff] %vm225, %v202
  %238 = vst.msk [vmem:[%s2 + $0x60] sm:$0xff] %vm225, %v207
  %239 = vst.msk [vmem:[%s2 + $0x68] sm:$0xff] %vm225, %v212
  %240 = vst.msk [vmem:[%s2 + $0x70] sm:$0xff] %vm225, %v217
  %241 = vst.msk [vmem:[%s2 + $0x78] sm:$0xff] %vm225, %v222
  // Predicated region
  $region10: #{tpu_custom_call.1} parent=0 // pred_check
    _
  $region11: #{tpu_custom_call.1} parent=0 // pred_check_branch
    %243 = sbr.rel (0) target = $region13
  $region12: #{tpu_custom_call.1} parent=0 // pred_region
    _
  $region13: #{tpu_custom_call.1} parent=0 // pred_fallthru
    _
  // Predicated region
  $region14: #{tpu_custom_call.1} parent=0 // pred_check
    _
  $region15: #{tpu_custom_call.1} parent=0 // pred_check_branch
    %245 = sbr.rel (0) target = $region17
  $region16: #{tpu_custom_call.1} parent=0 // pred_region
    _
  $region17: #{tpu_custom_call.1} parent=0 // pred_fallthru
    _

</llo_original>
